<compile_context>
chip_gen: v7x
topology: tpu7x:2x2x1
jax: 0.10.0
libtpu: 0.0.40
codegen_flags: <defaults>
</compile_context>

<pallas_src>
import functools

import jax
import jax.numpy as jnp
from jax.experimental import pallas as pl
from jax.experimental.pallas import tpu as pltpu

IN_DIM = 28 * 28            # 784
PAD_DIM = 128               # all hidden/output feature dims padded to one lane-vreg
LAYER_DIMS = [(IN_DIM, 100), (100, 50), (50, 30), (30, 10)]
TB_DEFAULT = 2048           # max batch tile (multiple of 16)
VMEM_LIMIT_BYTES = 48 * 1024 * 1024   # > v5e/v6e scoped default, < v7x 64 MiB/TC


def _round_up(x, m):
    return ((x + m - 1) // m) * m


def _mlp_kernel(x_ref, w1_ref, wh_ref, b_ref, o_ref, *, bf16_sigmoid):
    """Fused 4-layer MLP with sigmoid activations for one batch tile.

    x_ref   : (TB, 784) f32   -- cast to bf16 in-kernel (single HBM read of f32 x)
    w1_ref  : (784, 128) bf16 -- VMEM-resident across grid steps
    wh_ref  : (3, 128, 128) bf16 -- packed w2/w3/w4, VMEM-resident
    b_ref   : (4, 128) f32       -- packed biases, VMEM-resident
    o_ref   : (TB, 128) bf16     -- lane-dense output block
    Matmuls run on the MXU in bf16 with f32 accumulation; bias-add in f32;
    sigmoid in bf16 (v6e/v7x EUP) or f32 (v5e), result recast to bf16.
    """
    act_dtype = jnp.bfloat16 if bf16_sigmoid else jnp.float32

    def act(z_f32):
        return jax.nn.sigmoid(z_f32.astype(act_dtype)).astype(jnp.bfloat16)

    h = x_ref[...].astype(jnp.bfloat16)                                   # (TB, 784)
    h = act(jnp.dot(h, w1_ref[...], preferred_element_type=jnp.float32)
            + b_ref[0:1, :])                                              # (TB, 128)
    for k in range(3):                                                    # fc2..fc4
        h = act(jnp.dot(h, wh_ref[k], preferred_element_type=jnp.float32)
                + b_ref[k + 1:k + 2, :])
    o_ref[...] = h.astype(o_ref.dtype)


def prepare_params(params):
    """One-time host-side prep: transpose to (in, out), zero-pad feature dims to 128,
    pack hidden weights into (3,128,128) bf16 and biases into (4,128) f32.
    Rows beyond each true fan_in are ZERO (padded-lane invariant)."""
    (w1, b1), (w2, b2), (w3, b3), (w4, b4) = params

    w1p = jnp.zeros((IN_DIM, PAD_DIM), jnp.float32).at[:, :100].set(w1.T)
    w1p = w1p.astype(jnp.bfloat16)

    wh = jnp.zeros((3, PAD_DIM, PAD_DIM), jnp.float32)
    wh = wh.at[0, :100, :50].set(w2.T)
    wh = wh.at[1, :50, :30].set(w3.T)
    wh = wh.at[2, :30, :10].set(w4.T)
    wh = wh.astype(jnp.bfloat16)

    biases = jnp.zeros((4, PAD_DIM), jnp.float32)
    biases = biases.at[0, :100].set(b1)
    biases = biases.at[1, :50].set(b2)
    biases = biases.at[2, :30].set(b3)
    biases = biases.at[3, :10].set(b4)
    return w1p, wh, biases


@functools.partial(jax.jit, static_argnames=("block_b", "bf16_sigmoid"))
def nn_img2num_forward(img, prepared_params, block_b=TB_DEFAULT, bf16_sigmoid=True):
    """img: (B, 1, 28, 28) float32 NCHW (anything flattening to (-1, 784)).

    Returns (B, 10) float32: sigmoid outputs of the 4-layer MLP, matching the
    PyTorch forward (the discarded torch.max/pred is not reproduced).
    Pass bf16_sigmoid=False on v5e (no bf16 EUP datapath).
    """
    x = img.reshape(-1, IN_DIM).astype(jnp.float32)   # no wrapper bf16 cast, no pad
    b = x.shape[0]

    # Batch tile: multiple of 16, capped at ~ceil(B/2) so the grid has >=2 steps
    # when B allows it (keeps both v7x TensorCores busy), capped at block_b.
    tb = max(16, min(block_b, _round_up(-(-b // 2), 16)))
    grid = (pl.cdiv(b, tb),)   # ragged last tile handled by Pallas block masking

    w1, wh, biases = prepared_params

    flops = 2 * b * (IN_DIM * PAD_DIM + 3 * PAD_DIM * PAD_DIM)
    transcendentals = 4 * b * PAD_DIM
    bytes_accessed = (b * IN_DIM * 4          # f32 x read
                      + b * PAD_DIM * 2       # bf16 output write
                      + w1.size * 2 + wh.size * 2 + biases.size * 4)

    out = pl.pallas_call(
        functools.partial(_mlp_kernel, bf16_sigmoid=bf16_sigmoid),
        out_shape=jax.ShapeDtypeStruct((b, PAD_DIM), jnp.bfloat16),
        grid_spec=pltpu.PrefetchScalarGridSpec(
            num_scalar_prefetch=0,
            grid=grid,
            in_specs=[
                pl.BlockSpec((tb, IN_DIM), lambda i: (i, 0)),            # streamed x
                pl.BlockSpec((IN_DIM, PAD_DIM), lambda i: (0, 0)),       # resident w1
                pl.BlockSpec((3, PAD_DIM, PAD_DIM), lambda i: (0, 0, 0)),  # resident w2..w4
                pl.BlockSpec((4, PAD_DIM), lambda i: (0, 0)),            # resident biases
            ],
            out_specs=pl.BlockSpec((tb, PAD_DIM), lambda i: (i, 0)),
        ),
        compiler_params=pltpu.CompilerParams(
            dimension_semantics=("parallel",),       # megacore-shardable batch axis
            vmem_limit_bytes=VMEM_LIMIT_BYTES,
        ),
        cost_estimate=pl.CostEstimate(
            flops=flops,
            transcendentals=transcendentals,
            bytes_accessed=bytes_accessed,
        ),
    )(x, w1, wh, biases)

    # Drop the padded output lanes (10 real classes) and return f32 like PyTorch.
    return out[:, :10].astype(jnp.float32)


def init_params(key):
    """Deterministic init mimicking nn.Linear: U(-1/sqrt(in), 1/sqrt(in)).
    Stored PyTorch-style as (out, in) weight + (out,) bias."""
    params = []
    for (fan_in, fan_out) in LAYER_DIMS:
        key, kw, kb = jax.random.split(key, 3)
        bound = 1.0 / (fan_in ** 0.5)
        w = jax.random.uniform(kw, (fan_out, fan_in), jnp.float32, -bound, bound)
        b = jax.random.uniform(kb, (fan_out,), jnp.float32, -bound, bound)
        params.append((w, b))
    return tuple(params)


def _reference_forward(img, params):
    x = img.reshape(-1, IN_DIM).astype(jnp.float32)
    for (w, b) in params:
        x = jax.nn.sigmoid(x @ w.T + b)
    return x


if __name__ == "__main__":
    key = jax.random.PRNGKey(0)
    key, k_img = jax.random.split(key)

    # MNIST-shaped NCHW inputs at the module's batch size (60); normalized-ish range.
    # B=60 also exercises the ragged last tile (tb=32, grid=(2,), last block 28 rows).
    B = 60
    img = jax.random.uniform(k_img, (B, 1, 28, 28), jnp.float32, -1.0, 1.0)

    params = init_params(jax.random.PRNGKey(0))
    prepared = prepare_params(params)

    out = nn_img2num_forward(img, prepared)
    out = jax.block_until_ready(out)

    ref = _reference_forward(img, params)
    assert out.shape == (B, 10), out.shape
    # bf16 x/weights/sigmoid (f32 accumulation) -> loosened tolerance vs f32 reference.
    max_diff = float(jnp.max(jnp.abs(out - ref)))
    assert max_diff < 2.5e-2, f"mismatch vs reference (max abs diff {max_diff})"

    print("KERNEL_OK")
</pallas_src>

<mosaic_0001>
module attributes {stable_mosaic.version = 11 : i64} {
  func.func @_mlp_kernel(%arg0: i32, %arg1: memref<32x784xf32, #tpu.memory_space<vmem>>, %arg2: memref<784x128xbf16, #tpu.memory_space<vmem>>, %arg3: memref<3x128x128xbf16, #tpu.memory_space<vmem>>, %arg4: memref<4x128xf32, #tpu.memory_space<vmem>>, %arg5: memref<32x128xbf16, #tpu.memory_space<vmem>>) attributes {dimension_semantics = [#tpu.dimension_semantics<parallel>], iteration_bounds = array<i64: 2>, scalar_prefetch = 0 : i64, scratch_operands = 0 : i64, tpu.core_type = #tpu.core_type<tc>, window_params = [{transform_indices = @transform_0, window_bounds = array<i64: 32, 784>}, {pipeline_mode = #tpu.pipeline_mode<synchronous>, transform_indices = @transform_1, window_bounds = array<i64: 784, 128>}, {pipeline_mode = #tpu.pipeline_mode<synchronous>, transform_indices = @transform_2, window_bounds = array<i64: 3, 128, 128>}, {pipeline_mode = #tpu.pipeline_mode<synchronous>, transform_indices = @transform_3, window_bounds = array<i64: 4, 128>}, {transform_indices = @transform_4, window_bounds = array<i64: 32, 128>}]} {
    %c0 = arith.constant 0 : index
    %c0_0 = arith.constant 0 : index
    %0 = vector.load %arg1[%c0, %c0_0] : memref<32x784xf32, #tpu.memory_space<vmem>>, vector<32x784xf32>
    %1 = arith.truncf %0 : vector<32x784xf32> to vector<32x784xbf16>
    %c0_1 = arith.constant 0 : index
    %c0_2 = arith.constant 0 : index
    %2 = vector.load %arg2[%c0_1, %c0_2] : memref<784x128xbf16, #tpu.memory_space<vmem>>, vector<784x128xbf16>
    %cst = arith.constant dense<0.000000e+00> : vector<32x128xf32>
    %3 = tpu.matmul %1, %2, %cst {dimension_numbers = #tpu.dot_dimension_numbers<[1], [0], [0], [1], [0, 0, 1, 1], [], []>} : vector<32x784xbf16>, vector<784x128xbf16>, vector<32x128xf32> -> vector<32x128xf32>
    %c0_3 = arith.constant 0 : index
    %c0_4 = arith.constant 0 : index
    %4 = vector.load %arg4[%c0_3, %c0_4] : memref<4x128xf32, #tpu.memory_space<vmem>>, vector<1x128xf32>
    %5 = vector.broadcast %4 : vector<1x128xf32> to vector<32x128xf32>
    %6 = arith.addf %3, %5 : vector<32x128xf32>
    %7 = arith.truncf %6 : vector<32x128xf32> to vector<32x128xbf16>
    %8 = arith.negf %7 : vector<32x128xbf16>
    %9 = math.exp %8 : vector<32x128xbf16>
    %cst_5 = arith.constant 1.000000e+00 : bf16
    %10 = vector.broadcast %cst_5 : bf16 to vector<32x128xbf16>
    %11 = arith.addf %10, %9 : vector<32x128xbf16>
    %12 = arith.divf %10, %11 : vector<32x128xbf16>
    %c0_6 = arith.constant 0 : index
    %c0_7 = arith.constant 0 : index
    %c0_8 = arith.constant 0 : index
    %13 = vector.load %arg3[%c0_6, %c0_7, %c0_8] : memref<3x128x128xbf16, #tpu.memory_space<vmem>>, vector<1x128x128xbf16>
    %14 = vector.shape_cast %13 : vector<1x128x128xbf16> to vector<128x128xbf16>
    %cst_9 = arith.constant dense<0.000000e+00> : vector<32x128xf32>
    %15 = tpu.matmul %12, %14, %cst_9 {dimension_numbers = #tpu.dot_dimension_numbers<[1], [0], [0], [1], [0, 0, 1, 1], [], []>} : vector<32x128xbf16>, vector<128x128xbf16>, vector<32x128xf32> -> vector<32x128xf32>
    %c1 = arith.constant 1 : index
    %c0_10 = arith.constant 0 : index
    %16 = vector.load %arg4[%c1, %c0_10] : memref<4x128xf32, #tpu.memory_space<vmem>>, vector<1x128xf32>
    %17 = vector.broadcast %16 : vector<1x128xf32> to vector<32x128xf32>
    %18 = arith.addf %15, %17 : vector<32x128xf32>
    %19 = arith.truncf %18 : vector<32x128xf32> to vector<32x128xbf16>
    %20 = arith.negf %19 : vector<32x128xbf16>
    %21 = math.exp %20 : vector<32x128xbf16>
    %cst_11 = arith.constant 1.000000e+00 : bf16
    %22 = vector.broadcast %cst_11 : bf16 to vector<32x128xbf16>
    %23 = arith.addf %22, %21 : vector<32x128xbf16>
    %24 = arith.divf %22, %23 : vector<32x128xbf16>
    %c1_12 = arith.constant 1 : index
    %c0_13 = arith.constant 0 : index
    %c0_14 = arith.constant 0 : index
    %25 = vector.load %arg3[%c1_12, %c0_13, %c0_14] : memref<3x128x128xbf16, #tpu.memory_space<vmem>>, vector<1x128x128xbf16>
    %26 = vector.shape_cast %25 : vector<1x128x128xbf16> to vector<128x128xbf16>
    %cst_15 = arith.constant dense<0.000000e+00> : vector<32x128xf32>
    %27 = tpu.matmul %24, %26, %cst_15 {dimension_numbers = #tpu.dot_dimension_numbers<[1], [0], [0], [1], [0, 0, 1, 1], [], []>} : vector<32x128xbf16>, vector<128x128xbf16>, vector<32x128xf32> -> vector<32x128xf32>
    %c2 = arith.constant 2 : index
    %c0_16 = arith.constant 0 : index
    %28 = vector.load %arg4[%c2, %c0_16] : memref<4x128xf32, #tpu.memory_space<vmem>>, vector<1x128xf32>
    %29 = vector.broadcast %28 : vector<1x128xf32> to vector<32x128xf32>
    %30 = arith.addf %27, %29 : vector<32x128xf32>
    %31 = arith.truncf %30 : vector<32x128xf32> to vector<32x128xbf16>
    %32 = arith.negf %31 : vector<32x128xbf16>
    %33 = math.exp %32 : vector<32x128xbf16>
    %cst_17 = arith.constant 1.000000e+00 : bf16
    %34 = vector.broadcast %cst_17 : bf16 to vector<32x128xbf16>
    %35 = arith.addf %34, %33 : vector<32x128xbf16>
    %36 = arith.divf %34, %35 : vector<32x128xbf16>
    %c2_18 = arith.constant 2 : index
    %c0_19 = arith.constant 0 : index
    %c0_20 = arith.constant 0 : index
    %37 = vector.load %arg3[%c2_18, %c0_19, %c0_20] : memref<3x128x128xbf16, #tpu.memory_space<vmem>>, vector<1x128x128xbf16>
    %38 = vector.shape_cast %37 : vector<1x128x128xbf16> to vector<128x128xbf16>
    %cst_21 = arith.constant dense<0.000000e+00> : vector<32x128xf32>
    %39 = tpu.matmul %36, %38, %cst_21 {dimension_numbers = #tpu.dot_dimension_numbers<[1], [0], [0], [1], [0, 0, 1, 1], [], []>} : vector<32x128xbf16>, vector<128x128xbf16>, vector<32x128xf32> -> vector<32x128xf32>
    %c3 = arith.constant 3 : index
    %c0_22 = arith.constant 0 : index
    %40 = vector.load %arg4[%c3, %c0_22] : memref<4x128xf32, #tpu.memory_space<vmem>>, vector<1x128xf32>
    %41 = vector.broadcast %40 : vector<1x128xf32> to vector<32x128xf32>
    %42 = arith.addf %39, %41 : vector<32x128xf32>
    %43 = arith.truncf %42 : vector<32x128xf32> to vector<32x128xbf16>
    %44 = arith.negf %43 : vector<32x128xbf16>
    %45 = math.exp %44 : vector<32x128xbf16>
    %cst_23 = arith.constant 1.000000e+00 : bf16
    %46 = vector.broadcast %cst_23 : bf16 to vector<32x128xbf16>
    %47 = arith.addf %46, %45 : vector<32x128xbf16>
    %48 = arith.divf %46, %47 : vector<32x128xbf16>
    %c0_24 = arith.constant 0 : index
    %c0_25 = arith.constant 0 : index
    %49 = vector.load %arg5[%c0_24, %c0_25] : memref<32x128xbf16, #tpu.memory_space<vmem>>, vector<32x128xbf16>
    tpu.vector_store %arg5[%c0_24, %c0_25], %48 {strides = array<i32>} : memref<32x128xbf16, #tpu.memory_space<vmem>>, vector<32x128xbf16>,
    return
  }
  func.func @transform_0(%arg0: i32) -> (i32, i32) {
    %c0_i32 = arith.constant 0 : i32
    %c0_i32_0 = arith.constant 0 : i32
    return %arg0, %c0_i32 : i32, i32
  }
  func.func @transform_1(%arg0: i32) -> (i32, i32) {
    %c0_i32 = arith.constant 0 : i32
    %c0_i32_0 = arith.constant 0 : i32
    %c0_i32_1 = arith.constant 0 : i32
    return %c0_i32, %c0_i32_0 : i32, i32
  }
  func.func @transform_2(%arg0: i32) -> (i32, i32, i32) {
    %c0_i32 = arith.constant 0 : i32
    %c0_i32_0 = arith.constant 0 : i32
    %c0_i32_1 = arith.constant 0 : i32
    %c0_i32_2 = arith.constant 0 : i32
    return %c0_i32, %c0_i32_0, %c0_i32_1 : i32, i32, i32
  }
  func.func @transform_3(%arg0: i32) -> (i32, i32) {
    %c0_i32 = arith.constant 0 : i32
    %c0_i32_0 = arith.constant 0 : i32
    %c0_i32_1 = arith.constant 0 : i32
    return %c0_i32, %c0_i32_0 : i32, i32
  }
  func.func @transform_4(%arg0: i32) -> (i32, i32) {
    %c0_i32 = arith.constant 0 : i32
    %c0_i32_0 = arith.constant 0 : i32
    return %arg0, %c0_i32 : i32, i32
  }
}

</mosaic_0001>

<llo_original>
// kernel: nn_img2num_forward.1
$region0: #{nn_img2num_forward.1}
  #allocation0 [shape = 'u32[]', space=smem, size = 0x4, offset = 0x4, fixed_abs, tag = 'smem constant byte address 0x4 - core index']
  #allocation1 [shape = 'u32[144,128]{1,0:T(1,128)}', space=vmem, size = 0x12000, scoped, tag = 'internal scratch']
  %s0 = inlined_call_operand.vmem [shape: f32[60,784], index: 0, kind: input, shape index: {}]
  %s1 = inlined_call_operand.vmem [shape: bf16[784,128], index: 1, kind: input, shape index: {}]
  %s2 = inlined_call_operand.vmem [shape: bf16[3,128,128], index: 2, kind: input, shape index: {}]
  %s3 = inlined_call_operand.vmem [shape: f32[4,128], index: 3, kind: input, shape index: {}]
  %s4 = inlined_call_operand.vmem [shape: bf16[60,128], index: 4, kind: output, shape index: {}]
  %s5 = sld [smem:[#allocation0]]
  $region49: #{nn_img2num_forward.1} parent=0
    _
  %s7 = ssub.s32 1, %s5
  %s8 = scalar_select 0, %s7, %s5
  loop: start=0, step=1, limit=4
  $region2: #{nn_img2num_forward.1} parent=0 // loop_pre_header
    _
  $region3: #{nn_img2num_forward.1} parent=0 // loop_header
    %s10 = sphi 0, %s14
    %p11 = scmp.ge.s32.totalorder %s10, 4
    %s20 = sphi 0, %s22
    %s23 = sphi 0, %s20
    %s24 = sphi 0, %s23
    %s40 = sphi 0, %s24
    %s44 = sphi 0, %s44
    %s46 = sphi 0, %s44
    %s47 = sphi 0, %s46
    %s61 = sphi 0, %s47
    %s65 = sphi 0, %s65
    %s67 = sphi 0, %s65
    %s68 = sphi 0, %s67
    %s82 = sphi 0, %s68
    %s86 = sphi 0, %s86
    %s88 = sphi 0, %s86
    %s89 = sphi 0, %s88
    %s103 = sphi 0, %s89
    %s109 = sphi 0, %s111
    %s112 = sphi 0, %s109
    %s113 = sphi 0, %s112
    %s129 = sphi 0, %s113
  $region4: #{nn_img2num_forward.1} parent=0 // loop_header_branch
    %13 = sbr.rel (%p11) target = $region8
  $region5: #{nn_img2num_forward.1} parent=0 // loop_body
    %s15 = ssub.s32 %s10, 1
    %s16 = ssub.s32 %s10, 2
    %s17 = sadd.s32 %s10, 1
    %s18 = ssub.s32 %s10, %s17
    %p19 = scmp.eq.s32.totalorder %s18, 0
    %s21 = sadd.s32 %s20, 1
    %s22 = scalar_select %p19, %s20, %s21
    %p25 = pneg %p19
    %p26 = scmp.eq.s32.totalorder %s10, 1
    %p27 = por %p25, %p26
    %p28 = scmp.ne.s32.totalorder %s20, %s23
    %p29 = scmp.eq.s32.totalorder %s10, 0
    %p30 = por %p28, %p29
    %p31 = scmp.ne.s32.totalorder %s20, %s23
    %p32 = scmp.eq.s32.totalorder %s15, 1
    %p33 = por %p31, %p32
    %p34 = scmp.ne.s32.totalorder %s23, %s24
    %p35 = scmp.eq.s32.totalorder %s15, 0
    %p36 = por %p34, %p35
    %p37 = scmp.ne.s32.totalorder %s23, %s24
    %p38 = scmp.eq.s32.totalorder %s16, 1
    %p39 = por %p37, %p38
    %p41 = scmp.ne.s32.totalorder %s24, %s40
    %p42 = scmp.eq.s32.totalorder %s16, 0
    %p43 = por %p41, %p42
    %s45 = sadd.s32 %s44, 1
    %p48 = scmp.eq.s32.totalorder %s10, 1
    %p49 = scmp.ne.s32.totalorder %s44, %s46
    %p50 = scmp.eq.s32.totalorder %s10, 0
    %p51 = por %p49, %p50
    %p52 = scmp.ne.s32.totalorder %s44, %s46
    %p53 = scmp.eq.s32.totalorder %s15, 1
    %p54 = por %p52, %p53
    %p55 = scmp.ne.s32.totalorder %s46, %s47
    %p56 = scmp.eq.s32.totalorder %s15, 0
    %p57 = por %p55, %p56
    %p58 = scmp.ne.s32.totalorder %s46, %s47
    %p59 = scmp.eq.s32.totalorder %s16, 1
    %p60 = por %p58, %p59
    %p62 = scmp.ne.s32.totalorder %s47, %s61
    %p63 = scmp.eq.s32.totalorder %s16, 0
    %p64 = por %p62, %p63
    %s66 = sadd.s32 %s65, 1
    %p69 = scmp.eq.s32.totalorder %s10, 1
    %p70 = scmp.ne.s32.totalorder %s65, %s67
    %p71 = scmp.eq.s32.totalorder %s10, 0
    %p72 = por %p70, %p71
    %p73 = scmp.ne.s32.totalorder %s65, %s67
    %p74 = scmp.eq.s32.totalorder %s15, 1
    %p75 = por %p73, %p74
    %p76 = scmp.ne.s32.totalorder %s67, %s68
    %p77 = scmp.eq.s32.totalorder %s15, 0
    %p78 = por %p76, %p77
    %p79 = scmp.ne.s32.totalorder %s67, %s68
    %p80 = scmp.eq.s32.totalorder %s16, 1
    %p81 = por %p79, %p80
    %p83 = scmp.ne.s32.totalorder %s68, %s82
    %p84 = scmp.eq.s32.totalorder %s16, 0
    %p85 = por %p83, %p84
    %s87 = sadd.s32 %s86, 1
    %p90 = scmp.eq.s32.totalorder %s10, 1
    %p91 = scmp.ne.s32.totalorder %s86, %s88
    %p92 = scmp.eq.s32.totalorder %s10, 0
    %p93 = por %p91, %p92
    %p94 = scmp.ne.s32.totalorder %s86, %s88
    %p95 = scmp.eq.s32.totalorder %s15, 1
    %p96 = por %p94, %p95
    %p97 = scmp.ne.s32.totalorder %s88, %s89
    %p98 = scmp.eq.s32.totalorder %s15, 0
    %p99 = por %p97, %p98
    %p100 = scmp.ne.s32.totalorder %s88, %s89
    %p101 = scmp.eq.s32.totalorder %s16, 1
    %p102 = por %p100, %p101
    %p104 = scmp.ne.s32.totalorder %s89, %s103
    %p105 = scmp.eq.s32.totalorder %s16, 0
    %p106 = por %p104, %p105
    %s107 = ssub.s32 %s10, %s17
    %p108 = scmp.eq.s32.totalorder %s107, 0
    %s110 = sadd.s32 %s109, 1
    %s111 = scalar_select %p108, %s109, %s110
    %p114 = pneg %p108
    %p115 = scmp.eq.s32.totalorder %s10, 1
    %p116 = por %p114, %p115
    %p117 = scmp.ne.s32.totalorder %s109, %s112
    %p118 = scmp.eq.s32.totalorder %s10, 0
    %p119 = por %p117, %p118
    %p120 = scmp.ne.s32.totalorder %s109, %s112
    %p121 = scmp.eq.s32.totalorder %s15, 1
    %p122 = por %p120, %p121
    %p123 = scmp.ne.s32.totalorder %s112, %s113
    %p124 = scmp.eq.s32.totalorder %s15, 0
    %p125 = por %p123, %p124
    %p126 = scmp.ne.s32.totalorder %s112, %s113
    %p127 = scmp.eq.s32.totalorder %s16, 1
    %p128 = por %p126, %p127
    %p130 = scmp.ne.s32.totalorder %s113, %s129
    %p131 = scmp.eq.s32.totalorder %s16, 0
    %p132 = por %p130, %p131
    %p133 = scmp.le.s32.totalorder 1, %s10
    %p134 = scmp.lt.s32.totalorder %s10, 3
    %p135 = pnand %p133, %p134
    %p136 = pneg %p135
    // Predicated region
    $region9: #{nn_img2num_forward.1} parent=5 // pred_check
      _
    $region10: #{nn_img2num_forward.1} parent=5 // pred_check_branch
      %138 = sbr.rel (%p135) target = $region12
    $region11: #{nn_img2num_forward.1} parent=5 // pred_region
      %s139 = ssub.s32 %s10, 1
      // Predicated region
      $region13: #{nn_img2num_forward.1} parent=11 // pred_check
        %p140 = pneg %p57
      $region14: #{nn_img2num_forward.1} parent=11 // pred_check_branch
        %142 = sbr.rel (%p140) target = $region16
      $region15: #{nn_img2num_forward.1} parent=11 // pred_region
        _
      $region16: #{nn_img2num_forward.1} parent=11 // pred_fallthru
        _
      // Predicated region
      $region17: #{nn_img2num_forward.1} parent=11 // pred_check
        %p143 = pneg %p78
      $region18: #{nn_img2num_forward.1} parent=11 // pred_check_branch
        %145 = sbr.rel (%p143) target = $region20
      $region19: #{nn_img2num_forward.1} parent=11 // pred_region
        _
      $region20: #{nn_img2num_forward.1} parent=11 // pred_fallthru
        _
      // Predicated region
      $region21: #{nn_img2num_forward.1} parent=11 // pred_check
        %p146 = pneg %p99
      $region22: #{nn_img2num_forward.1} parent=11 // pred_check_branch
        %148 = sbr.rel (%p146) target = $region24
      $region23: #{nn_img2num_forward.1} parent=11 // pred_region
        _
      $region24: #{nn_img2num_forward.1} parent=11 // pred_fallthru
        _
    $region12: #{nn_img2num_forward.1} parent=5 // pred_fallthru
      _
    %p149 = scmp.lt.s32.totalorder %s10, 2
    // Predicated region
    $region25: #{nn_img2num_forward.1} parent=5 // pred_check
      %p150 = pneg %p149
    $region26: #{nn_img2num_forward.1} parent=5 // pred_check_branch
      %152 = sbr.rel (%p150) target = $region28
    $region27: #{nn_img2num_forward.1} parent=5 // pred_region
      // Predicated region
      $region29: #{nn_img2num_forward.1} parent=27 // pred_check
        %p153 = pneg %p30
      $region30: #{nn_img2num_forward.1} parent=27 // pred_check_branch
        %155 = sbr.rel (%p153) target = $region32
      $region31: #{nn_img2num_forward.1} parent=27 // pred_region
        %s156 = smul.u32 4, %s10
        %p157 = scmp.lt.s32.totalorder %s156, 7
        %s158 = scalar_select %p157, %s156, 7
        %s159 = smul.addr %s158, 7
        %s160 = smul.addr %s159, 8
        %s161 = scalar_lea.vmem %s0, %s160
        %s162 = smul.u32 4, %s10
      $region32: #{nn_img2num_forward.1} parent=27 // pred_fallthru
        _
    $region28: #{nn_img2num_forward.1} parent=5 // pred_fallthru
      _
    %p163 = scmp.le.s32.totalorder 1, %s10
    %p164 = scmp.lt.s32.totalorder %s10, 3
    %p165 = pnand %p163, %p164
    %p166 = pneg %p165
    // Predicated region
    $region33: #{nn_img2num_forward.1} parent=5 // pred_check
      _
    $region34: #{nn_img2num_forward.1} parent=5 // pred_check_branch
      %168 = sbr.rel (%p165) target = $region36
    $region35: #{nn_img2num_forward.1} parent=5 // pred_region
      %s169 = ssub.s32 %s10, 1
      %s170 = smul.u32 4, %s15
      %p171 = scmp.lt.s32.totalorder %s170, 7
      %s172 = scalar_select %p171, %s170, 7
      %s173 = smul.addr %s172, 7
      %s174 = smul.addr %s173, 8
      %s175 = scalar_lea.vmem %s0, %s174
      %p176 = pneg %p36
      %p177 = pneg %p33
      %p178 = pneg %p57
      %p179 = pneg %p54
      %p180 = pneg %p78
      %p181 = pneg %p75
      %p182 = pneg %p99
      %p183 = pneg %p96
      %p184 = pneg %p125
      %p185 = pneg %p122
      %s186 = smul.u32 4, %s15
      %p187 = scmp.lt.s32.totalorder %s186, 7
      %s188 = scalar_select %p187, %s186, 7
      %s189 = smul.addr %s188, 4
      %s190 = scalar_lea.vmem %s4, %s189
      %s191 = smul.u32 4, %s15
      %p192 = scmp.lt.s32.totalorder %s191, 7
      %s193 = scalar_select %p192, %s191, 7
      %s194 = smul.addr %s193, 7
      %s195 = smul.addr %s194, 8
      %s196 = scalar_lea.vmem %s0, %s195
      %s197 = smul.u32 4, %s15
      %s198 = smul.u32 4, %s15
      %p199 = scmp.lt.s32.totalorder %s198, 7
      %s200 = scalar_select %p199, %s198, 7
      %s201 = smul.addr %s200, 4
      %s202 = scalar_lea.vmem %s4, %s201
      %s203 = smul.u32 4, %s15
      %v206 = vld [vmem:[%s196] sm:$0xff]
      %v207 = vld [vmem:[%s196 + $0x8] sm:$0xff]
      %v208 = vld [vmem:[%s196 + $0x10] sm:$0xff]
      %v209 = vld [vmem:[%s196 + $0x18] sm:$0xff]
      %v210 = vld [vmem:[%s196 + $0x20] sm:$0xff]
      %v211 = vld [vmem:[%s196 + $0x28] sm:$0xff]
      %v212 = vld [vmem:[%s196 + $0x30] sm:$0xff]
      %v213 = vld [vmem:[%s196 + $0x38] sm:$0xff]
      %v214 = vld [vmem:[%s196 + $0x40] sm:$0xff]
      %v215 = vld [vmem:[%s196 + $0x48] sm:$0xff]
      %v216 = vld [vmem:[%s196 + $0x50] sm:$0xff]
      %v217 = vld [vmem:[%s196 + $0x58] sm:$0xff]
      %v218 = vld [vmem:[%s196 + $0x60] sm:$0xff]
      %v219 = vld [vmem:[%s196 + $0x68] sm:$0xff]
      %v220 = vld [vmem:[%s196 + $0x70] sm:$0xff]
      %v221 = vld [vmem:[%s196 + $0x78] sm:$0xff]
      %v222 = vld [vmem:[%s196 + $0x80] sm:$0xff]
      %v223 = vld [vmem:[%s196 + $0x88] sm:$0xff]
      %v224 = vld [vmem:[%s196 + $0x90] sm:$0xff]
      %v225 = vld [vmem:[%s196 + $0x98] sm:$0xff]
      %v226 = vld [vmem:[%s196 + $0xa0] sm:$0xff]
      %v227 = vld [vmem:[%s196 + $0xa8] sm:$0xff]
      %v228 = vld [vmem:[%s196 + $0xb0] sm:$0xff]
      %v229 = vld [vmem:[%s196 + $0xb8] sm:$0xff]
      %v230 = vld [vmem:[%s196 + $0xc0] sm:$0xff]
      %v231 = vld [vmem:[%s196 + $0xc8] sm:$0xff]
      %v232 = vld [vmem:[%s196 + $0xd0] sm:$0xff]
      %v233 = vld [vmem:[%s196 + $0xd8] sm:$0xff]
      %v234 = vpack.c.bf16 %v213, %v206
      %v235 = vpack.c.bf16 %v214, %v207
      %v236 = vpack.c.bf16 %v215, %v208
      %v237 = vpack.c.bf16 %v216, %v209
      %v238 = vpack.c.bf16 %v217, %v210
      %v239 = vpack.c.bf16 %v218, %v211
      %v240 = vpack.c.bf16 %v219, %v212
      %v241 = vpack.c.bf16 %v227, %v220
      %v242 = vpack.c.bf16 %v228, %v221
      %v243 = vpack.c.bf16 %v229, %v222
      %v244 = vpack.c.bf16 %v230, %v223
      %v245 = vpack.c.bf16 %v231, %v224
      %v246 = vpack.c.bf16 %v232, %v225
      %v247 = vpack.c.bf16 %v233, %v226
      %v248 = vld [vmem:[%s1] sm:$0xf]
      %v249 = vld [vmem:[%s1 + $0x4] sm:$0xf]
      %v250 = vld [vmem:[%s1 + $0x8] sm:$0xf]
      %v251 = vld [vmem:[%s1 + $0xc] sm:$0xf]
      %v252 = vld [vmem:[%s1 + $0x10] sm:$0xf]
      %v253 = vld [vmem:[%s1 + $0x14] sm:$0xf]
      %v254 = vld [vmem:[%s1 + $0x18] sm:$0xf]
      %v255 = vld [vmem:[%s1 + $0x1c] sm:$0xf]
      %v256 = vld [vmem:[%s1 + $0x20] sm:$0xf]
      %v257 = vld [vmem:[%s1 + $0x24] sm:$0xf]
      %v258 = vld [vmem:[%s1 + $0x28] sm:$0xf]
      %v259 = vld [vmem:[%s1 + $0x2c] sm:$0xf]
      %v260 = vld [vmem:[%s1 + $0x30] sm:$0xf]
      %v261 = vld [vmem:[%s1 + $0x34] sm:$0xf]
      %v262 = vld [vmem:[%s1 + $0x38] sm:$0xf]
      %v263 = vld [vmem:[%s1 + $0x3c] sm:$0xf]
      %v264 = vld [vmem:[%s1 + $0x40] sm:$0xf]
      %v265 = vld [vmem:[%s1 + $0x44] sm:$0xf]
      %v266 = vld [vmem:[%s1 + $0x48] sm:$0xf]
      %v267 = vld [vmem:[%s1 + $0x4c] sm:$0xf]
      %v268 = vld [vmem:[%s1 + $0x50] sm:$0xf]
      %v269 = vld [vmem:[%s1 + $0x54] sm:$0xf]
      %v270 = vld [vmem:[%s1 + $0x58] sm:$0xf]
      %v271 = vld [vmem:[%s1 + $0x5c] sm:$0xf]
      %v272 = vld [vmem:[%s1 + $0x60] sm:$0xf]
      %v273 = vld [vmem:[%s1 + $0x64] sm:$0xf]
      %v274 = vld [vmem:[%s1 + $0x68] sm:$0xf]
      %v275 = vld [vmem:[%s1 + $0x6c] sm:$0xf]
      %v276 = vld [vmem:[%s1 + $0x70] sm:$0xf]
      %v277 = vld [vmem:[%s1 + $0x74] sm:$0xf]
      %v278 = vld [vmem:[%s1 + $0x78] sm:$0xf]
      %v279 = vld [vmem:[%s1 + $0x7c] sm:$0xf]
      %v280 = vld [vmem:[%s1 + $0x80] sm:$0xf]
      %v281 = vld [vmem:[%s1 + $0x84] sm:$0xf]
      %v282 = vld [vmem:[%s1 + $0x88] sm:$0xf]
      %v283 = vld [vmem:[%s1 + $0x8c] sm:$0xf]
      %v284 = vld [vmem:[%s1 + $0x90] sm:$0xf]
      %v285 = vld [vmem:[%s1 + $0x94] sm:$0xf]
      %v286 = vld [vmem:[%s1 + $0x98] sm:$0xf]
      %v287 = vld [vmem:[%s1 + $0x9c] sm:$0xf]
      %v288 = vld [vmem:[%s1 + $0xa0] sm:$0xf]
      %v289 = vld [vmem:[%s1 + $0xa4] sm:$0xf]
      %v290 = vld [vmem:[%s1 + $0xa8] sm:$0xf]
      %v291 = vld [vmem:[%s1 + $0xac] sm:$0xf]
      %v292 = vld [vmem:[%s1 + $0xb0] sm:$0xf]
      %v293 = vld [vmem:[%s1 + $0xb4] sm:$0xf]
      %v294 = vld [vmem:[%s1 + $0xb8] sm:$0xf]
      %v295 = vld [vmem:[%s1 + $0xbc] sm:$0xf]
      %v296 = vld [vmem:[%s1 + $0xc0] sm:$0xf]
      %v297 = vld [vmem:[%s1 + $0xc4] sm:$0xf]
      %v298 = vld [vmem:[%s1 + $0xc8] sm:$0xf]
      %v299 = vld [vmem:[%s1 + $0xcc] sm:$0xf]
      %v300 = vld [vmem:[%s1 + $0xd0] sm:$0xf]
      %v301 = vld [vmem:[%s1 + $0xd4] sm:$0xf]
      %v302 = vld [vmem:[%s1 + $0xd8] sm:$0xf]
      %v303 = vld [vmem:[%s1 + $0xdc] sm:$0xf]
      %v304 = vld [vmem:[%s1 + $0xe0] sm:$0xf]
      %v305 = vld [vmem:[%s1 + $0xe4] sm:$0xf]
      %v306 = vld [vmem:[%s1 + $0xe8] sm:$0xf]
      %v307 = vld [vmem:[%s1 + $0xec] sm:$0xf]
      %v308 = vld [vmem:[%s1 + $0xf0] sm:$0xf]
      %v309 = vld [vmem:[%s1 + $0xf4] sm:$0xf]
      %v310 = vld [vmem:[%s1 + $0xf8] sm:$0xf]
      %v311 = vld [vmem:[%s1 + $0xfc] sm:$0xf]
      %v312 = vld [vmem:[%s1 + $0x100] sm:$0xf]
      %v313 = vld [vmem:[%s1 + $0x104] sm:$0xf]
      %v314 = vld [vmem:[%s1 + $0x108] sm:$0xf]
      %v315 = vld [vmem:[%s1 + $0x10c] sm:$0xf]
      %v316 = vld [vmem:[%s1 + $0x110] sm:$0xf]
      %v317 = vld [vmem:[%s1 + $0x114] sm:$0xf]
      %v318 = vld [vmem:[%s1 + $0x118] sm:$0xf]
      %v319 = vld [vmem:[%s1 + $0x11c] sm:$0xf]
      %v320 = vld [vmem:[%s1 + $0x120] sm:$0xf]
      %v321 = vld [vmem:[%s1 + $0x124] sm:$0xf]
      %v322 = vld [vmem:[%s1 + $0x128] sm:$0xf]
      %v323 = vld [vmem:[%s1 + $0x12c] sm:$0xf]
      %v324 = vld [vmem:[%s1 + $0x130] sm:$0xf]
      %v325 = vld [vmem:[%s1 + $0x134] sm:$0xf]
      %v326 = vld [vmem:[%s1 + $0x138] sm:$0xf]
      %v327 = vld [vmem:[%s1 + $0x13c] sm:$0xf]
      %v328 = vld [vmem:[%s1 + $0x140] sm:$0xf]
      %v329 = vld [vmem:[%s1 + $0x144] sm:$0xf]
      %v330 = vld [vmem:[%s1 + $0x148] sm:$0xf]
      %v331 = vld [vmem:[%s1 + $0x14c] sm:$0xf]
      %v332 = vld [vmem:[%s1 + $0x150] sm:$0xf]
      %v333 = vld [vmem:[%s1 + $0x154] sm:$0xf]
      %v334 = vld [vmem:[%s1 + $0x158] sm:$0xf]
      %v335 = vld [vmem:[%s1 + $0x15c] sm:$0xf]
      %v336 = vld [vmem:[%s1 + $0x160] sm:$0xf]
      %v337 = vld [vmem:[%s1 + $0x164] sm:$0xf]
      %v338 = vld [vmem:[%s1 + $0x168] sm:$0xf]
      %v339 = vld [vmem:[%s1 + $0x16c] sm:$0xf]
      %v340 = vld [vmem:[%s1 + $0x170] sm:$0xf]
      %v341 = vld [vmem:[%s1 + $0x174] sm:$0xf]
      %v342 = vld [vmem:[%s1 + $0x178] sm:$0xf]
      %v343 = vld [vmem:[%s1 + $0x17c] sm:$0xf]
      %v344 = vld [vmem:[%s1 + $0x180] sm:$0xf]
      %v345 = vld [vmem:[%s1 + $0x184] sm:$0xf]
      %v346 = vld [vmem:[%s3] sm:$0x1]
      %v347 = vlaneseq
      %v348 = vshrl.u32 %v347, 7
      %v349 = vsub.s32 0, %v348
      %v350 = vrot.slane %v346, %v349
      %v449 = vunpack.c.l.b16 %v248
      %v450 = vunpack.c.l.b16 %v249
      %v451 = vunpack.c.l.b16 %v250
      %v452 = vunpack.c.l.b16 %v251
      %v453 = vunpack.c.l.b16 %v252
      %v454 = vunpack.c.l.b16 %v253
      %v455 = vunpack.c.l.b16 %v254
      %v456 = vunpack.c.l.b16 %v255
      %v457 = vunpack.c.l.b16 %v256
      %v458 = vunpack.c.l.b16 %v257
      %v459 = vunpack.c.l.b16 %v258
      %v460 = vunpack.c.l.b16 %v259
      %v461 = vunpack.c.l.b16 %v260
      %v462 = vunpack.c.l.b16 %v261
      %v463 = vunpack.c.l.b16 %v262
      %v464 = vunpack.c.l.b16 %v263
      %v465 = vunpack.c.l.b16 %v264
      %v466 = vunpack.c.l.b16 %v265
      %v467 = vunpack.c.l.b16 %v266
      %v468 = vunpack.c.l.b16 %v267
      %v469 = vunpack.c.l.b16 %v268
      %v470 = vunpack.c.l.b16 %v269
      %v471 = vunpack.c.l.b16 %v270
      %v472 = vunpack.c.l.b16 %v271
      %v473 = vunpack.c.l.b16 %v272
      %v474 = vunpack.c.l.b16 %v273
      %v475 = vunpack.c.l.b16 %v274
      %v476 = vunpack.c.l.b16 %v275
      %v477 = vunpack.c.l.b16 %v276
      %v478 = vunpack.c.l.b16 %v277
      %v479 = vunpack.c.l.b16 %v278
      %v480 = vunpack.c.l.b16 %v279
      %v481 = vunpack.c.l.b16 %v280
      %v482 = vunpack.c.l.b16 %v281
      %v483 = vunpack.c.l.b16 %v282
      %v484 = vunpack.c.l.b16 %v283
      %v485 = vunpack.c.l.b16 %v284
      %v486 = vunpack.c.l.b16 %v285
      %v487 = vunpack.c.l.b16 %v286
      %v488 = vunpack.c.l.b16 %v287
      %v489 = vunpack.c.l.b16 %v288
      %v490 = vunpack.c.l.b16 %v289
      %v491 = vunpack.c.l.b16 %v290
      %v492 = vunpack.c.l.b16 %v291
      %v493 = vunpack.c.l.b16 %v292
      %v494 = vunpack.c.l.b16 %v293
      %v495 = vunpack.c.l.b16 %v294
      %v496 = vunpack.c.l.b16 %v295
      %v497 = vunpack.c.l.b16 %v296
      %v498 = vunpack.c.l.b16 %v297
      %v499 = vunpack.c.l.b16 %v298
      %v500 = vunpack.c.l.b16 %v299
      %v501 = vunpack.c.l.b16 %v300
      %v502 = vunpack.c.l.b16 %v301
      %v503 = vunpack.c.l.b16 %v302
      %v504 = vunpack.c.l.b16 %v303
      %v505 = vunpack.c.l.b16 %v304
      %v506 = vunpack.c.l.b16 %v305
      %v507 = vunpack.c.l.b16 %v306
      %v508 = vunpack.c.l.b16 %v307
      %v509 = vunpack.c.l.b16 %v308
      %v510 = vunpack.c.l.b16 %v309
      %v511 = vunpack.c.l.b16 %v310
      %v512 = vunpack.c.l.b16 %v311
      %v513 = vunpack.c.l.b16 %v312
      %v514 = vunpack.c.l.b16 %v313
      %v515 = vunpack.c.l.b16 %v314
      %v516 = vunpack.c.l.b16 %v315
      %v517 = vunpack.c.l.b16 %v316
      %v518 = vunpack.c.l.b16 %v317
      %v519 = vunpack.c.l.b16 %v318
      %v520 = vunpack.c.l.b16 %v319
      %v521 = vunpack.c.l.b16 %v320
      %v522 = vunpack.c.l.b16 %v321
      %v523 = vunpack.c.l.b16 %v322
      %v524 = vunpack.c.l.b16 %v323
      %v525 = vunpack.c.l.b16 %v324
      %v526 = vunpack.c.l.b16 %v325
      %v527 = vunpack.c.l.b16 %v326
      %v528 = vunpack.c.l.b16 %v327
      %v529 = vunpack.c.l.b16 %v328
      %v530 = vunpack.c.l.b16 %v329
      %v531 = vunpack.c.l.b16 %v330
      %v532 = vunpack.c.l.b16 %v331
      %v533 = vunpack.c.l.b16 %v332
      %v534 = vunpack.c.l.b16 %v333
      %v535 = vunpack.c.l.b16 %v334
      %v536 = vunpack.c.l.b16 %v335
      %v537 = vunpack.c.l.b16 %v336
      %v538 = vunpack.c.l.b16 %v337
      %v539 = vunpack.c.l.b16 %v338
      %v540 = vunpack.c.l.b16 %v339
      %v541 = vunpack.c.l.b16 %v340
      %v542 = vunpack.c.l.b16 %v341
      %v543 = vunpack.c.l.b16 %v342
      %v544 = vunpack.c.l.b16 %v343
      %v545 = vunpack.c.l.b16 %v344
      %v546 = vunpack.c.l.b16 %v345
      %v547 = vpack.c.b16 %v450, %v449
      %v548 = vpack.c.b16 %v452, %v451
      %v549 = vpack.c.b16 %v454, %v453
      %v550 = vpack.c.b16 %v456, %v455
      %v551 = vpack.c.b16 %v458, %v457
      %v552 = vpack.c.b16 %v460, %v459
      %v553 = vpack.c.b16 %v462, %v461
      %v554 = vpack.c.b16 %v464, %v463
      %v555 = vpack.c.b16 %v466, %v465
      %v556 = vpack.c.b16 %v468, %v467
      %v557 = vpack.c.b16 %v470, %v469
      %v558 = vpack.c.b16 %v472, %v471
      %v559 = vpack.c.b16 %v474, %v473
      %v560 = vpack.c.b16 %v476, %v475
      %v561 = vpack.c.b16 %v478, %v477
      %v562 = vpack.c.b16 %v480, %v479
      %v563 = vpack.c.b16 %v482, %v481
      %v564 = vpack.c.b16 %v484, %v483
      %v565 = vpack.c.b16 %v486, %v485
      %v566 = vpack.c.b16 %v488, %v487
      %v567 = vpack.c.b16 %v490, %v489
      %v568 = vpack.c.b16 %v492, %v491
      %v569 = vpack.c.b16 %v494, %v493
      %v570 = vpack.c.b16 %v496, %v495
      %v571 = vpack.c.b16 %v498, %v497
      %v572 = vpack.c.b16 %v500, %v499
      %v573 = vpack.c.b16 %v502, %v501
      %v574 = vpack.c.b16 %v504, %v503
      %v575 = vpack.c.b16 %v506, %v505
      %v576 = vpack.c.b16 %v508, %v507
      %v577 = vpack.c.b16 %v510, %v509
      %v578 = vpack.c.b16 %v512, %v511
      %v579 = vpack.c.b16 %v514, %v513
      %v580 = vpack.c.b16 %v516, %v515
      %v581 = vpack.c.b16 %v518, %v517
      %v582 = vpack.c.b16 %v520, %v519
      %v583 = vpack.c.b16 %v522, %v521
      %v584 = vpack.c.b16 %v524, %v523
      %v585 = vpack.c.b16 %v526, %v525
      %v586 = vpack.c.b16 %v528, %v527
      %v587 = vpack.c.b16 %v530, %v529
      %v588 = vpack.c.b16 %v532, %v531
      %v589 = vpack.c.b16 %v534, %v533
      %v590 = vpack.c.b16 %v536, %v535
      %v591 = vpack.c.b16 %v538, %v537
      %v592 = vpack.c.b16 %v540, %v539
      %v593 = vpack.c.b16 %v542, %v541
      %v594 = vpack.c.b16 %v544, %v543
      %v595 = vpack.c.b16 %v546, %v545
      %vm645 = vcmask 130048
      %v647 = vsel %vm645, %v240, 0
      %v650 = vsel %vm645, %v247, 0
      %652 = vmatprep.subr.bf16.mxu0 0
      %653 = vmatpush1.bf16.msra.mxu0 %v547
      %654 = vmatprep.subr.bf16.mxu0 0
      %655 = vmatpush1.bf16.msra.mxu0 %v548
      %656 = vmatprep.subr.bf16.mxu0 0
      %657 = vmatpush1.bf16.msra.mxu0 %v549
      %658 = vmatprep.subr.bf16.mxu0 0
      %659 = vmatpush1.bf16.msra.mxu0 %v550
      %660 = vmatprep.subr.bf16.mxu0 0
      %661 = vmatpush1.bf16.msra.mxu0 %v551
      %662 = vmatprep.subr.bf16.mxu0 0
      %663 = vmatpush1.bf16.msra.mxu0 %v552
      %664 = vmatprep.subr.bf16.mxu0 0
      %665 = vmatpush1.bf16.msra.mxu0 %v553
      %666 = vmatprep.subr.bf16.mxu0 0
      %667 = vmatpush1.bf16.msra.mxu0 %v554
      %668 = vmatprep.subr.bf16.mxu0 0
      %669 = vmatpush1.bf16.msra.mxu0 %v555
      %670 = vmatprep.subr.bf16.mxu0 0
      %671 = vmatpush1.bf16.msra.mxu0 %v556
      %672 = vmatprep.subr.bf16.mxu0 0
      %673 = vmatpush1.bf16.msra.mxu0 %v557
      %674 = vmatprep.subr.bf16.mxu0 0
      %675 = vmatpush1.bf16.msra.mxu0 %v558
      %676 = vmatprep.subr.bf16.mxu0 0
      %677 = vmatpush1.bf16.msra.mxu0 %v559
      %678 = vmatprep.subr.bf16.mxu0 0
      %679 = vmatpush1.bf16.msra.mxu0 %v560
      %680 = vmatprep.subr.bf16.mxu0 0
      %681 = vmatpush1.bf16.msra.mxu0 %v561
      %682 = vmatprep.subr.bf16.mxu0 0
      %683 = vmatpush1.bf16.msra.mxu0 %v562
      %684 = vmatprep.mubr.bf16.mxu0 %v235
      %685 = vmatmul.mubr.bf16.gmra.mrb[0].mxu0 %v234
      %v686 = vpop.f32.mrb[0].mxu0
      %v687 = vadd.f32 %v350, %v686
      %v688 = vpop.f32.mrb[0].mxu0
      %v689 = vpop.f32.mrb[0].mxu0
      %v690 = vadd.f32 %v350, %v689
      %v691 = vpop.f32.mrb[0].mxu0
      %692 = vmatprep.mubr.bf16.mxu0 %v242
      %693 = vmatmul.mubr.bf16.gmra.mrb[0].mxu0 %v241
      %v694 = vpop.f32.mrb[0].mxu0
      %v695 = vadd.f32 %v350, %v694
      %v696 = vpop.f32.mrb[0].mxu0
      %v697 = vpop.f32.mrb[0].mxu0
      %v698 = vadd.f32 %v350, %v697
      %v699 = vpop.f32.mrb[0].mxu0
      %700 = vdwg.mxu0
      %701 = vmatprep.subr.bf16.mxu0 0
      %702 = vmatpush1.bf16.msra.mxu0 %v563
      %703 = vmatprep.subr.bf16.mxu0 0
      %704 = vmatpush1.bf16.msra.mxu0 %v564
      %705 = vmatprep.subr.bf16.mxu0 0
      %706 = vmatpush1.bf16.msra.mxu0 %v565
      %707 = vmatprep.subr.bf16.mxu0 0
      %708 = vmatpush1.bf16.msra.mxu0 %v566
      %709 = vmatprep.subr.bf16.mxu0 0
      %710 = vmatpush1.bf16.msra.mxu0 %v567
      %711 = vmatprep.subr.bf16.mxu0 0
      %712 = vmatpush1.bf16.msra.mxu0 %v568
      %713 = vmatprep.subr.bf16.mxu0 0
      %714 = vmatpush1.bf16.msra.mxu0 %v569
      %715 = vmatprep.subr.bf16.mxu0 0
      %716 = vmatpush1.bf16.msra.mxu0 %v570
      %717 = vmatprep.subr.bf16.mxu0 0
      %718 = vmatpush1.bf16.msra.mxu0 %v571
      %719 = vmatprep.subr.bf16.mxu0 0
      %720 = vmatpush1.bf16.msra.mxu0 %v572
      %721 = vmatprep.subr.bf16.mxu0 0
      %722 = vmatpush1.bf16.msra.mxu0 %v573
      %723 = vmatprep.subr.bf16.mxu0 0
      %724 = vmatpush1.bf16.msra.mxu0 %v574
      %725 = vmatprep.subr.bf16.mxu0 0
      %726 = vmatpush1.bf16.msra.mxu0 %v575
      %727 = vmatprep.subr.bf16.mxu0 0
      %728 = vmatpush1.bf16.msra.mxu0 %v576
      %729 = vmatprep.subr.bf16.mxu0 0
      %730 = vmatpush1.bf16.msra.mxu0 %v577
      %731 = vmatprep.subr.bf16.mxu0 0
      %732 = vmatpush1.bf16.msra.mxu0 %v578
      %733 = vmatprep.mubr.bf16.mxu0 %v237
      %734 = vmatmul.mubr.bf16.gmra.mrb[0].mxu0 %v236
      %v735 = vpop.f32.mrb[0].mxu0
      %v736 = vadd.f32 %v687, %v735
      %v737 = vpop.f32.mrb[0].mxu0
      %v738 = vpop.f32.mrb[0].mxu0
      %v739 = vadd.f32 %v690, %v738
      %v740 = vpop.f32.mrb[0].mxu0
      %741 = vmatprep.mubr.bf16.mxu0 %v244
      %742 = vmatmul.mubr.bf16.gmra.mrb[0].mxu0 %v243
      %v743 = vpop.f32.mrb[0].mxu0
      %v744 = vadd.f32 %v695, %v743
      %v745 = vpop.f32.mrb[0].mxu0
      %v746 = vpop.f32.mrb[0].mxu0
      %v747 = vadd.f32 %v698, %v746
      %v748 = vpop.f32.mrb[0].mxu0
      %749 = vdwg.mxu0
      %750 = vmatprep.subr.bf16.mxu0 0
      %751 = vmatpush1.bf16.msra.mxu0 %v579
      %752 = vmatprep.subr.bf16.mxu0 0
      %753 = vmatpush1.bf16.msra.mxu0 %v580
      %754 = vmatprep.subr.bf16.mxu0 0
      %755 = vmatpush1.bf16.msra.mxu0 %v581
      %756 = vmatprep.subr.bf16.mxu0 0
      %757 = vmatpush1.bf16.msra.mxu0 %v582
      %758 = vmatprep.subr.bf16.mxu0 0
      %759 = vmatpush1.bf16.msra.mxu0 %v583
      %760 = vmatprep.subr.bf16.mxu0 0
      %761 = vmatpush1.bf16.msra.mxu0 %v584
      %762 = vmatprep.subr.bf16.mxu0 0
      %763 = vmatpush1.bf16.msra.mxu0 %v585
      %764 = vmatprep.subr.bf16.mxu0 0
      %765 = vmatpush1.bf16.msra.mxu0 %v586
      %766 = vmatprep.subr.bf16.mxu0 0
      %767 = vmatpush1.bf16.msra.mxu0 %v587
      %768 = vmatprep.subr.bf16.mxu0 0
      %769 = vmatpush1.bf16.msra.mxu0 %v588
      %770 = vmatprep.subr.bf16.mxu0 0
      %771 = vmatpush1.bf16.msra.mxu0 %v589
      %772 = vmatprep.subr.bf16.mxu0 0
      %773 = vmatpush1.bf16.msra.mxu0 %v590
      %774 = vmatprep.subr.bf16.mxu0 0
      %775 = vmatpush1.bf16.msra.mxu0 %v591
      %776 = vmatprep.subr.bf16.mxu0 0
      %777 = vmatpush1.bf16.msra.mxu0 %v592
      %778 = vmatprep.subr.bf16.mxu0 0
      %779 = vmatpush1.bf16.msra.mxu0 %v593
      %780 = vmatprep.subr.bf16.mxu0 0
      %781 = vmatpush1.bf16.msra.mxu0 %v594
      %782 = vmatprep.mubr.bf16.mxu0 %v239
      %783 = vmatmul.mubr.bf16.gmra.mrb[0].mxu0 %v238
      %v784 = vpop.f32.mrb[0].mxu0
      %v785 = vadd.f32 %v736, %v784
      %v786 = vpop.f32.mrb[0].mxu0
      %v787 = vpop.f32.mrb[0].mxu0
      %v788 = vadd.f32 %v739, %v787
      %v789 = vpop.f32.mrb[0].mxu0
      %790 = vmatprep.mubr.bf16.mxu0 %v246
      %791 = vmatmul.mubr.bf16.gmra.mrb[0].mxu0 %v245
      %v792 = vpop.f32.mrb[0].mxu0
      %v793 = vadd.f32 %v744, %v792
      %v794 = vpop.f32.mrb[0].mxu0
      %v795 = vpop.f32.mrb[0].mxu0
      %v796 = vadd.f32 %v747, %v795
      %v797 = vpop.f32.mrb[0].mxu0
      %798 = vdwg.mxu0
      %799 = vmatprep.subr.bf16.mxu0 0
      %800 = vmatpush1.bf16.msra.mxu0 %v595
      %801 = vmatprep.subr.bf16.mxu0 0
      %802 = vmatpush1.bf16.msra.mxu0 0
      %803 = vmatprep.subr.bf16.mxu0 0
      %804 = vmatpush1.bf16.msra.mxu0 0
      %805 = vmatprep.subr.bf16.mxu0 0
      %806 = vmatpush1.bf16.msra.mxu0 0
      %807 = vmatprep.subr.bf16.mxu0 0
      %808 = vmatpush1.bf16.msra.mxu0 0
      %809 = vmatprep.subr.bf16.mxu0 0
      %810 = vmatpush1.bf16.msra.mxu0 0
      %811 = vmatprep.subr.bf16.mxu0 0
      %812 = vmatpush1.bf16.msra.mxu0 0
      %813 = vmatprep.subr.bf16.mxu0 0
      %814 = vmatpush1.bf16.msra.mxu0 0
      %815 = vmatprep.subr.bf16.mxu0 0
      %816 = vmatpush1.bf16.msra.mxu0 0
      %817 = vmatprep.subr.bf16.mxu0 0
      %818 = vmatpush1.bf16.msra.mxu0 0
      %819 = vmatprep.subr.bf16.mxu0 0
      %820 = vmatpush1.bf16.msra.mxu0 0
      %821 = vmatprep.subr.bf16.mxu0 0
      %822 = vmatpush1.bf16.msra.mxu0 0
      %823 = vmatprep.subr.bf16.mxu0 0
      %824 = vmatpush1.bf16.msra.mxu0 0
      %825 = vmatprep.subr.bf16.mxu0 0
      %826 = vmatpush1.bf16.msra.mxu0 0
      %827 = vmatprep.subr.bf16.mxu0 0
      %828 = vmatpush1.bf16.msra.mxu0 0
      %829 = vmatprep.subr.bf16.mxu0 0
      %830 = vmatpush1.bf16.msra.mxu0 0
      %831 = vmatprep.mubr.bf16.mxu0 0
      %832 = vmatmul.mubr.bf16.gmra.mrb[0].mxu0 %v647
      %v833 = vpop.f32.mrb[0].mxu0
      %v834 = vadd.f32 %v785, %v833
      %v835 = vpop.f32.mrb[0].mxu0
      %v836 = vpop.f32.mrb[0].mxu0
      %v837 = vadd.f32 %v788, %v836
      %v838 = vpop.f32.mrb[0].mxu0
      %839 = vmatprep.mubr.bf16.mxu0 0
      %840 = vmatmul.mubr.bf16.gmra.mrb[0].mxu0 %v650
      %v841 = vpop.f32.mrb[0].mxu0
      %v842 = vadd.f32 %v793, %v841
      %v843 = vpop.f32.mrb[0].mxu0
      %v844 = vpop.f32.mrb[0].mxu0
      %v845 = vadd.f32 %v796, %v844
      %v846 = vpop.f32.mrb[0].mxu0
      %847 = vdwg.mxu0
      %v848 = vpack.c.bf16 %v837, %v834
      %v849 = vpack.c.bf16 %v845, %v842
      %v850 = vxor.u32 %v848, 2147516416
      %v851 = vxor.u32 %v849, 2147516416
      %v853 = vmul.bf16 %v850, 1069105081
      %v854 = vpow.bf16.pop %v853
      %v856 = vmul.bf16 %v851, 1069105081
      %v857 = vpow.bf16.pop %v856
      %v858 = vadd.bf16 %v854, 1065369472
      %v859 = vadd.bf16 %v857, 1065369472
      %v860 = vrcp.bf16.pop %v858
      %v861 = vmul.bf16 1065369472, %v860
      %v862 = vrcp.bf16.pop %v859
      %v863 = vmul.bf16 1065369472, %v862
      %v864 = vld [vmem:[%s2] sm:$0xf]
      %v865 = vld [vmem:[%s2 + $0x4] sm:$0xf]
      %v866 = vld [vmem:[%s2 + $0x8] sm:$0xf]
      %v867 = vld [vmem:[%s2 + $0xc] sm:$0xf]
      %v868 = vld [vmem:[%s2 + $0x10] sm:$0xf]
      %v869 = vld [vmem:[%s2 + $0x14] sm:$0xf]
      %v870 = vld [vmem:[%s2 + $0x18] sm:$0xf]
      %v871 = vld [vmem:[%s2 + $0x1c] sm:$0xf]
      %v872 = vld [vmem:[%s2 + $0x20] sm:$0xf]
      %v873 = vld [vmem:[%s2 + $0x24] sm:$0xf]
      %v874 = vld [vmem:[%s2 + $0x28] sm:$0xf]
      %v875 = vld [vmem:[%s2 + $0x2c] sm:$0xf]
      %v876 = vld [vmem:[%s2 + $0x30] sm:$0xf]
      %v877 = vld [vmem:[%s2 + $0x34] sm:$0xf]
      %v878 = vld [vmem:[%s2 + $0x38] sm:$0xf]
      %v879 = vld [vmem:[%s2 + $0x3c] sm:$0xf]
      %v880 = vld [vmem:[%s3 + $0x1] sm:$0x1]
      %v881 = vlaneseq
      %v882 = vshrl.u32 %v881, 7
      %v883 = vsub.s32 0, %v882
      %v884 = vrot.slane %v880, %v883
      %v901 = vunpack.c.l.b16 %v864
      %v902 = vunpack.c.l.b16 %v865
      %v903 = vunpack.c.l.b16 %v866
      %v904 = vunpack.c.l.b16 %v867
      %v905 = vunpack.c.l.b16 %v868
      %v906 = vunpack.c.l.b16 %v869
      %v907 = vunpack.c.l.b16 %v870
      %v908 = vunpack.c.l.b16 %v871
      %v909 = vunpack.c.l.b16 %v872
      %v910 = vunpack.c.l.b16 %v873
      %v911 = vunpack.c.l.b16 %v874
      %v912 = vunpack.c.l.b16 %v875
      %v913 = vunpack.c.l.b16 %v876
      %v914 = vunpack.c.l.b16 %v877
      %v915 = vunpack.c.l.b16 %v878
      %v916 = vunpack.c.l.b16 %v879
      %v917 = vpack.c.b16 %v902, %v901
      %v918 = vpack.c.b16 %v904, %v903
      %v919 = vpack.c.b16 %v906, %v905
      %v920 = vpack.c.b16 %v908, %v907
      %v921 = vpack.c.b16 %v910, %v909
      %v922 = vpack.c.b16 %v912, %v911
      %v923 = vpack.c.b16 %v914, %v913
      %v924 = vpack.c.b16 %v916, %v915
      %933 = vmatprep.subr.bf16.mxu0 0
      %934 = vmatpush1.bf16.msra.mxu0 %v917
      %935 = vmatprep.subr.bf16.mxu0 0
      %936 = vmatpush1.bf16.msra.mxu0 %v918
      %937 = vmatprep.subr.bf16.mxu0 0
      %938 = vmatpush1.bf16.msra.mxu0 %v919
      %939 = vmatprep.subr.bf16.mxu0 0
      %940 = vmatpush1.bf16.msra.mxu0 %v920
      %941 = vmatprep.subr.bf16.mxu0 0
      %942 = vmatpush1.bf16.msra.mxu0 %v921
      %943 = vmatprep.subr.bf16.mxu0 0
      %944 = vmatpush1.bf16.msra.mxu0 %v922
      %945 = vmatprep.subr.bf16.mxu0 0
      %946 = vmatpush1.bf16.msra.mxu0 %v923
      %947 = vmatprep.subr.bf16.mxu0 0
      %948 = vmatpush1.bf16.msra.mxu0 %v924
      %949 = vmatprep.subr.bf16.mxu0 0
      %950 = vmatpush1.bf16.msra.mxu0 0
      %951 = vmatprep.subr.bf16.mxu0 0
      %952 = vmatpush1.bf16.msra.mxu0 0
      %953 = vmatprep.subr.bf16.mxu0 0
      %954 = vmatpush1.bf16.msra.mxu0 0
      %955 = vmatprep.subr.bf16.mxu0 0
      %956 = vmatpush1.bf16.msra.mxu0 0
      %957 = vmatprep.subr.bf16.mxu0 0
      %958 = vmatpush1.bf16.msra.mxu0 0
      %959 = vmatprep.subr.bf16.mxu0 0
      %960 = vmatpush1.bf16.msra.mxu0 0
      %961 = vmatprep.subr.bf16.mxu0 0
      %962 = vmatpush1.bf16.msra.mxu0 0
      %963 = vmatprep.subr.bf16.mxu0 0
      %964 = vmatpush1.bf16.msra.mxu0 0
      %965 = vmatprep.mubr.bf16.mxu0 0
      %966 = vmatmul.mubr.bf16.gmra.mrb[0].mxu0 %v861
      %v967 = vpop.f32.mrb[0].mxu0
      %v968 = vadd.f32 %v884, %v967
      %v969 = vpop.f32.mrb[0].mxu0
      %v970 = vpop.f32.mrb[0].mxu0
      %v971 = vadd.f32 %v884, %v970
      %v972 = vpop.f32.mrb[0].mxu0
      %973 = vmatprep.mubr.bf16.mxu0 0
      %974 = vmatmul.mubr.bf16.gmra.mrb[0].mxu0 %v863
      %v975 = vpop.f32.mrb[0].mxu0
      %v976 = vadd.f32 %v884, %v975
      %v977 = vpop.f32.mrb[0].mxu0
      %v978 = vpop.f32.mrb[0].mxu0
      %v979 = vadd.f32 %v884, %v978
      %v980 = vpop.f32.mrb[0].mxu0
      %981 = vdwg.mxu0
      %v982 = vpack.c.bf16 %v971, %v968
      %v983 = vpack.c.bf16 %v979, %v976
      %v984 = vxor.u32 %v982, 2147516416
      %v985 = vxor.u32 %v983, 2147516416
      %v987 = vmul.bf16 %v984, 1069105081
      %v988 = vpow.bf16.pop %v987
      %v990 = vmul.bf16 %v985, 1069105081
      %v991 = vpow.bf16.pop %v990
      %v992 = vadd.bf16 %v988, 1065369472
      %v993 = vadd.bf16 %v991, 1065369472
      %v994 = vrcp.bf16.pop %v992
      %v995 = vmul.bf16 1065369472, %v994
      %v996 = vrcp.bf16.pop %v993
      %v997 = vmul.bf16 1065369472, %v996
      %s998 = scalar_lea.vmem %s2, 64
      %v999 = vld [vmem:[%s998] sm:$0xf]
      %v1000 = vld [vmem:[%s998 + $0x4] sm:$0xf]
      %v1001 = vld [vmem:[%s998 + $0x8] sm:$0xf]
      %v1002 = vld [vmem:[%s998 + $0xc] sm:$0xf]
      %v1003 = vld [vmem:[%s998 + $0x10] sm:$0xf]
      %v1004 = vld [vmem:[%s998 + $0x14] sm:$0xf]
      %v1005 = vld [vmem:[%s998 + $0x18] sm:$0xf]
      %v1006 = vld [vmem:[%s998 + $0x1c] sm:$0xf]
      %v1007 = vld [vmem:[%s998 + $0x20] sm:$0xf]
      %v1008 = vld [vmem:[%s998 + $0x24] sm:$0xf]
      %v1009 = vld [vmem:[%s998 + $0x28] sm:$0xf]
      %v1010 = vld [vmem:[%s998 + $0x2c] sm:$0xf]
      %v1011 = vld [vmem:[%s998 + $0x30] sm:$0xf]
      %v1012 = vld [vmem:[%s998 + $0x34] sm:$0xf]
      %v1013 = vld [vmem:[%s998 + $0x38] sm:$0xf]
      %v1014 = vld [vmem:[%s998 + $0x3c] sm:$0xf]
      %v1015 = vld [vmem:[%s3 + $0x2] sm:$0x1]
      %v1016 = vlaneseq
      %v1017 = vshrl.u32 %v1016, 7
      %v1018 = vsub.s32 0, %v1017
      %v1019 = vrot.slane %v1015, %v1018
      %v1036 = vunpack.c.l.b16 %v999
      %v1037 = vunpack.c.l.b16 %v1000
      %v1038 = vunpack.c.l.b16 %v1001
      %v1039 = vunpack.c.l.b16 %v1002
      %v1040 = vunpack.c.l.b16 %v1003
      %v1041 = vunpack.c.l.b16 %v1004
      %v1042 = vunpack.c.l.b16 %v1005
      %v1043 = vunpack.c.l.b16 %v1006
      %v1044 = vunpack.c.l.b16 %v1007
      %v1045 = vunpack.c.l.b16 %v1008
      %v1046 = vunpack.c.l.b16 %v1009
      %v1047 = vunpack.c.l.b16 %v1010
      %v1048 = vunpack.c.l.b16 %v1011
      %v1049 = vunpack.c.l.b16 %v1012
      %v1050 = vunpack.c.l.b16 %v1013
      %v1051 = vunpack.c.l.b16 %v1014
      %v1052 = vpack.c.b16 %v1037, %v1036
      %v1053 = vpack.c.b16 %v1039, %v1038
      %v1054 = vpack.c.b16 %v1041, %v1040
      %v1055 = vpack.c.b16 %v1043, %v1042
      %v1056 = vpack.c.b16 %v1045, %v1044
      %v1057 = vpack.c.b16 %v1047, %v1046
      %v1058 = vpack.c.b16 %v1049, %v1048
      %v1059 = vpack.c.b16 %v1051, %v1050
      %1068 = vmatprep.subr.bf16.mxu0 0
      %1069 = vmatpush1.bf16.msra.mxu0 %v1052
      %1070 = vmatprep.subr.bf16.mxu0 0
      %1071 = vmatpush1.bf16.msra.mxu0 %v1053
      %1072 = vmatprep.subr.bf16.mxu0 0
      %1073 = vmatpush1.bf16.msra.mxu0 %v1054
      %1074 = vmatprep.subr.bf16.mxu0 0
      %1075 = vmatpush1.bf16.msra.mxu0 %v1055
      %1076 = vmatprep.subr.bf16.mxu0 0
      %1077 = vmatpush1.bf16.msra.mxu0 %v1056
      %1078 = vmatprep.subr.bf16.mxu0 0
      %1079 = vmatpush1.bf16.msra.mxu0 %v1057
      %1080 = vmatprep.subr.bf16.mxu0 0
      %1081 = vmatpush1.bf16.msra.mxu0 %v1058
      %1082 = vmatprep.subr.bf16.mxu0 0
      %1083 = vmatpush1.bf16.msra.mxu0 %v1059
      %1084 = vmatprep.subr.bf16.mxu0 0
      %1085 = vmatpush1.bf16.msra.mxu0 0
      %1086 = vmatprep.subr.bf16.mxu0 0
      %1087 = vmatpush1.bf16.msra.mxu0 0
      %1088 = vmatprep.subr.bf16.mxu0 0
      %1089 = vmatpush1.bf16.msra.mxu0 0
      %1090 = vmatprep.subr.bf16.mxu0 0
      %1091 = vmatpush1.bf16.msra.mxu0 0
      %1092 = vmatprep.subr.bf16.mxu0 0
      %1093 = vmatpush1.bf16.msra.mxu0 0
      %1094 = vmatprep.subr.bf16.mxu0 0
      %1095 = vmatpush1.bf16.msra.mxu0 0
      %1096 = vmatprep.subr.bf16.mxu0 0
      %1097 = vmatpush1.bf16.msra.mxu0 0
      %1098 = vmatprep.subr.bf16.mxu0 0
      %1099 = vmatpush1.bf16.msra.mxu0 0
      %1100 = vmatprep.mubr.bf16.mxu0 0
      %1101 = vmatmul.mubr.bf16.gmra.mrb[0].mxu0 %v995
      %v1102 = vpop.f32.mrb[0].mxu0
      %v1103 = vadd.f32 %v1019, %v1102
      %v1104 = vpop.f32.mrb[0].mxu0
      %v1105 = vpop.f32.mrb[0].mxu0
      %v1106 = vadd.f32 %v1019, %v1105
      %v1107 = vpop.f32.mrb[0].mxu0
      %1108 = vmatprep.mubr.bf16.mxu0 0
      %1109 = vmatmul.mubr.bf16.gmra.mrb[0].mxu0 %v997
      %v1110 = vpop.f32.mrb[0].mxu0
      %v1111 = vadd.f32 %v1019, %v1110
      %v1112 = vpop.f32.mrb[0].mxu0
      %v1113 = vpop.f32.mrb[0].mxu0
      %v1114 = vadd.f32 %v1019, %v1113
      %v1115 = vpop.f32.mrb[0].mxu0
      %1116 = vdwg.mxu0
      %v1117 = vpack.c.bf16 %v1106, %v1103
      %v1118 = vpack.c.bf16 %v1114, %v1111
      %v1119 = vxor.u32 %v1117, 2147516416
      %v1120 = vxor.u32 %v1118, 2147516416
      %v1122 = vmul.bf16 %v1119, 1069105081
      %v1123 = vpow.bf16.pop %v1122
      %v1125 = vmul.bf16 %v1120, 1069105081
      %v1126 = vpow.bf16.pop %v1125
      %v1127 = vadd.bf16 %v1123, 1065369472
      %v1128 = vadd.bf16 %v1126, 1065369472
      %v1129 = vrcp.bf16.pop %v1127
      %v1130 = vmul.bf16 1065369472, %v1129
      %v1131 = vrcp.bf16.pop %v1128
      %v1132 = vmul.bf16 1065369472, %v1131
      %s1133 = scalar_lea.vmem %s2, 128
      %v1134 = vld [vmem:[%s1133] sm:$0xf]
      %v1135 = vld [vmem:[%s1133 + $0x4] sm:$0xf]
      %v1136 = vld [vmem:[%s1133 + $0x8] sm:$0xf]
      %v1137 = vld [vmem:[%s1133 + $0xc] sm:$0xf]
      %v1138 = vld [vmem:[%s1133 + $0x10] sm:$0xf]
      %v1139 = vld [vmem:[%s1133 + $0x14] sm:$0xf]
      %v1140 = vld [vmem:[%s1133 + $0x18] sm:$0xf]
      %v1141 = vld [vmem:[%s1133 + $0x1c] sm:$0xf]
      %v1142 = vld [vmem:[%s1133 + $0x20] sm:$0xf]
      %v1143 = vld [vmem:[%s1133 + $0x24] sm:$0xf]
      %v1144 = vld [vmem:[%s1133 + $0x28] sm:$0xf]
      %v1145 = vld [vmem:[%s1133 + $0x2c] sm:$0xf]
      %v1146 = vld [vmem:[%s1133 + $0x30] sm:$0xf]
      %v1147 = vld [vmem:[%s1133 + $0x34] sm:$0xf]
      %v1148 = vld [vmem:[%s1133 + $0x38] sm:$0xf]
      %v1149 = vld [vmem:[%s1133 + $0x3c] sm:$0xf]
      %v1150 = vld [vmem:[%s3 + $0x3] sm:$0x1]
      %v1151 = vlaneseq
      %v1152 = vshrl.u32 %v1151, 7
      %v1153 = vsub.s32 0, %v1152
      %v1154 = vrot.slane %v1150, %v1153
      %v1171 = vunpack.c.l.b16 %v1134
      %v1172 = vunpack.c.l.b16 %v1135
      %v1173 = vunpack.c.l.b16 %v1136
      %v1174 = vunpack.c.l.b16 %v1137
      %v1175 = vunpack.c.l.b16 %v1138
      %v1176 = vunpack.c.l.b16 %v1139
      %v1177 = vunpack.c.l.b16 %v1140
      %v1178 = vunpack.c.l.b16 %v1141
      %v1179 = vunpack.c.l.b16 %v1142
      %v1180 = vunpack.c.l.b16 %v1143
      %v1181 = vunpack.c.l.b16 %v1144
      %v1182 = vunpack.c.l.b16 %v1145
      %v1183 = vunpack.c.l.b16 %v1146
      %v1184 = vunpack.c.l.b16 %v1147
      %v1185 = vunpack.c.l.b16 %v1148
      %v1186 = vunpack.c.l.b16 %v1149
      %v1187 = vpack.c.b16 %v1172, %v1171
      %v1188 = vpack.c.b16 %v1174, %v1173
      %v1189 = vpack.c.b16 %v1176, %v1175
      %v1190 = vpack.c.b16 %v1178, %v1177
      %v1191 = vpack.c.b16 %v1180, %v1179
      %v1192 = vpack.c.b16 %v1182, %v1181
      %v1193 = vpack.c.b16 %v1184, %v1183
      %v1194 = vpack.c.b16 %v1186, %v1185
      %1203 = vmatprep.subr.bf16.mxu0 0
      %1204 = vmatpush1.bf16.msra.mxu0 %v1187
      %1205 = vmatprep.subr.bf16.mxu0 0
      %1206 = vmatpush1.bf16.msra.mxu0 %v1188
      %1207 = vmatprep.subr.bf16.mxu0 0
      %1208 = vmatpush1.bf16.msra.mxu0 %v1189
      %1209 = vmatprep.subr.bf16.mxu0 0
      %1210 = vmatpush1.bf16.msra.mxu0 %v1190
      %1211 = vmatprep.subr.bf16.mxu0 0
      %1212 = vmatpush1.bf16.msra.mxu0 %v1191
      %1213 = vmatprep.subr.bf16.mxu0 0
      %1214 = vmatpush1.bf16.msra.mxu0 %v1192
      %1215 = vmatprep.subr.bf16.mxu0 0
      %1216 = vmatpush1.bf16.msra.mxu0 %v1193
      %1217 = vmatprep.subr.bf16.mxu0 0
      %1218 = vmatpush1.bf16.msra.mxu0 %v1194
      %1219 = vmatprep.subr.bf16.mxu0 0
      %1220 = vmatpush1.bf16.msra.mxu0 0
      %1221 = vmatprep.subr.bf16.mxu0 0
      %1222 = vmatpush1.bf16.msra.mxu0 0
      %1223 = vmatprep.subr.bf16.mxu0 0
      %1224 = vmatpush1.bf16.msra.mxu0 0
      %1225 = vmatprep.subr.bf16.mxu0 0
      %1226 = vmatpush1.bf16.msra.mxu0 0
      %1227 = vmatprep.subr.bf16.mxu0 0
      %1228 = vmatpush1.bf16.msra.mxu0 0
      %1229 = vmatprep.subr.bf16.mxu0 0
      %1230 = vmatpush1.bf16.msra.mxu0 0
      %1231 = vmatprep.subr.bf16.mxu0 0
      %1232 = vmatpush1.bf16.msra.mxu0 0
      %1233 = vmatprep.subr.bf16.mxu0 0
      %1234 = vmatpush1.bf16.msra.mxu0 0
      %1235 = vmatprep.mubr.bf16.mxu0 0
      %1236 = vmatmul.mubr.bf16.gmra.mrb[0].mxu0 %v1130
      %v1237 = vpop.f32.mrb[0].mxu0
      %v1238 = vadd.f32 %v1154, %v1237
      %v1239 = vpop.f32.mrb[0].mxu0
      %v1240 = vpop.f32.mrb[0].mxu0
      %v1241 = vadd.f32 %v1154, %v1240
      %v1242 = vpop.f32.mrb[0].mxu0
      %1243 = vmatprep.mubr.bf16.mxu0 0
      %1244 = vmatmul.mubr.bf16.gmra.mrb[0].mxu0 %v1132
      %v1245 = vpop.f32.mrb[0].mxu0
      %v1246 = vadd.f32 %v1154, %v1245
      %v1247 = vpop.f32.mrb[0].mxu0
      %v1248 = vpop.f32.mrb[0].mxu0
      %v1249 = vadd.f32 %v1154, %v1248
      %v1250 = vpop.f32.mrb[0].mxu0
      %1251 = vdwg.mxu0
      %v1252 = vpack.c.bf16 %v1241, %v1238
      %v1253 = vpack.c.bf16 %v1249, %v1246
      %v1254 = vxor.u32 %v1252, 2147516416
      %v1255 = vxor.u32 %v1253, 2147516416
      %v1257 = vmul.bf16 %v1254, 1069105081
      %v1258 = vpow.bf16.pop %v1257
      %v1260 = vmul.bf16 %v1255, 1069105081
      %v1261 = vpow.bf16.pop %v1260
      %v1262 = vadd.bf16 %v1258, 1065369472
      %v1263 = vadd.bf16 %v1261, 1065369472
      %v1264 = vrcp.bf16.pop %v1262
      %v1265 = vmul.bf16 1065369472, %v1264
      %v1266 = vrcp.bf16.pop %v1263
      %v1267 = vmul.bf16 1065369472, %v1266
      %v1270 = vunpack.c.l.b16 %v1265
      %v1271 = vunpack.c.h.b16 %v1265
      %v1272 = vunpack.c.l.b16 %v1267
      %v1273 = vunpack.c.h.b16 %v1267
      %v1274 = vpack.c.b16 %v1270, %v1270
      %v1275 = vpack.c.b16 %v1271, %v1271
      %v1276 = vpack.c.b16 %v1272, %v1272
      %v1277 = vpack.c.b16 %v1273, %v1273
      %1282 = vst [vmem:[%s202] sm:$0xf] %v1274
      %1283 = vst [vmem:[%s202 + $0x4] sm:$0xf] %v1275
      %1284 = vst [vmem:[%s202 + $0x8] sm:$0xf] %v1276
      %1285 = vst [vmem:[%s202 + $0xc] sm:$0xf] %v1277
      %s1286 = smul.u32 4, %s15
      %p1287 = scmp.lt.s32.totalorder %s1286, 7
      %s1288 = scalar_select %p1287, %s1286, 7
      %s1289 = smul.addr %s1288, 4
      %s1290 = scalar_lea.vmem %s4, %s1289
      // Predicated region
      $region37: #{nn_img2num_forward.1} parent=35 // pred_check
        %p1291 = pneg %p122
      $region38: #{nn_img2num_forward.1} parent=35 // pred_check_branch
        %1293 = sbr.rel (%p1291) target = $region40
      $region39: #{nn_img2num_forward.1} parent=35 // pred_region
        %s1294 = smul.u32 4, %s15
      $region40: #{nn_img2num_forward.1} parent=35 // pred_fallthru
        _
    $region36: #{nn_img2num_forward.1} parent=5 // pred_fallthru
      _
    %p1295 = scmp.le.s32.totalorder 2, %s10
    // Predicated region
    $region41: #{nn_img2num_forward.1} parent=5 // pred_check
      %p1296 = pneg %p1295
    $region42: #{nn_img2num_forward.1} parent=5 // pred_check_branch
      %1298 = sbr.rel (%p1296) target = $region44
    $region43: #{nn_img2num_forward.1} parent=5 // pred_region
      %s1299 = ssub.s32 %s10, 2
      // Predicated region
      $region45: #{nn_img2num_forward.1} parent=43 // pred_check
        %p1300 = pneg %p128
      $region46: #{nn_img2num_forward.1} parent=43 // pred_check_branch
        %1302 = sbr.rel (%p1300) target = $region48
      $region47: #{nn_img2num_forward.1} parent=43 // pred_region
        %s1303 = smul.u32 4, %s16
        %p1304 = scmp.lt.s32.totalorder %s1303, 7
        %s1305 = scalar_select %p1304, %s1303, 7
        %s1306 = smul.addr %s1305, 4
        %s1307 = scalar_lea.vmem %s4, %s1306
      $region48: #{nn_img2num_forward.1} parent=43 // pred_fallthru
        _
    $region44: #{nn_img2num_forward.1} parent=5 // pred_fallthru
      _
  $region6: #{nn_img2num_forward.1} parent=0 // loop_footer
    %s14 = sadd.s32 1, %s10
  $region7: #{nn_img2num_forward.1} parent=0 // loop_footer_branch
    %9 = sbr.rel target = $region3
  $region8: #{nn_img2num_forward.1} parent=0 // loop_exit
    _

</llo_original>
